<compile_context>
chip_gen: v6e
topology: v6e:2x2x1
jax: 0.10.0
libtpu: 0.0.40
codegen_flags: <defaults>
</compile_context>

<pallas_src>
import numpy as np
import jax
import jax.numpy as jnp
from jax.experimental import pallas as pl
from jax.experimental.pallas import tpu as pltpu

F32 = jnp.float32
BF16 = jnp.bfloat16
NEG_BIG = -1e30                     # padded-logit value (softmax-neutral)
VMEM_LIMIT = 48 * 1024 * 1024       # raise v5e's 16 MiB scoped default
VMEM_BUDGET = 24 * 1024 * 1024      # target working set when choosing tiles


def _round_up(x, m):
    return ((x + m - 1) // m) * m


def choose_tiling(n, l, target_tm=512):
    """Row-tile TM (multiple of 8/16) and padded node count for one level."""
    n8 = _round_up(max(n, 1), 8)
    tm = min(target_tm, n8)
    while True:
        n_pad = _round_up(n8, tm)
        # adj row stripe (bf16, double buffered) + 2 activation scratches (f32)
        need = 2 * (tm * n_pad * 2) + 4 * (n_pad * l * 4)
        if need <= VMEM_BUDGET or tm <= 16:
            return tm, n_pad
        tm = max(16, tm // 2)


# ----------------------------------------------------------------------
# Fused multi-layer SAGEConv stack (row-tiled A @ X, bf16 adjacency)
# ----------------------------------------------------------------------
def _make_sage_stack_kernel(multi_layer):
    def kernel(adj_ref, x_ref, w_ref, b_ref, out_ref, xc_ref=None, xn_ref=None):
        lyr = pl.program_id(0)
        r = pl.program_id(1)
        tm = adj_ref.shape[0]
        l = out_ref.shape[1]

        if multi_layer:
            # New layer starts: (re)load the layer input into the "current x"
            # scratch (ping-pong with the "next x" scratch).
            @pl.when(jnp.logical_and(lyr == 0, r == 0))
            def _():
                xc_ref[...] = x_ref[...]

            @pl.when(jnp.logical_and(lyr > 0, r == 0))
            def _():
                xc_ref[...] = xn_ref[...]

            src = xc_ref
        else:
            src = x_ref

        # Neighbour mean: (TM, Npad) bf16 adjacency stripe @ full X (bf16),
        # f32 MXU accumulation.
        agg = jnp.dot(adj_ref[...], src[...].astype(BF16),
                      preferred_element_type=jnp.float32)

        row0 = pl.multiple_of(r * tm, tm)
        x_self = src[pl.ds(row0, tm), :]

        # SAGE update with the fused/stacked weight [Wl; Wr] (two lane-aligned
        # K=l dots; an in-kernel lane concat of two 16-wide tiles is avoided
        # for Mosaic lowering robustness).
        w = w_ref[...]
        h = (jnp.dot(agg, w[:l, :], preferred_element_type=jnp.float32)
             + jnp.dot(x_self, w[l:, :], preferred_element_type=jnp.float32)
             + b_ref[...])
        h = jnp.maximum(h, 0.0)                       # activation = relu

        if multi_layer:
            xn_ref[pl.ds(row0, tm), :] = h            # next layer's input
        out_ref[...] = h
    return kernel


def sage_stack(adj, x, w_stack, b_stack, *, tm):
    """Run `L` SAGEConv(+relu) layers that share the same adjacency."""
    num_layers, two_l, l = w_stack.shape
    n_pad = x.shape[0]
    num_r = n_pad // tm
    multi = num_layers > 1
    scratch = ([pltpu.VMEM((n_pad, l), F32), pltpu.VMEM((n_pad, l), F32)]
               if multi else [])
    # Single-layer stacks have no cross-row dependency -> row axis can be
    # sharded across TensorCores (v7x megacore).  Multi-layer stacks carry
    # activations in the ping-pong scratch and must stay sequential.
    sem = ("arbitrary", "arbitrary") if multi else ("arbitrary", "parallel")
    return pl.pallas_call(
        _make_sage_stack_kernel(multi),
        out_shape=jax.ShapeDtypeStruct((n_pad, l), F32),
        grid_spec=pltpu.PrefetchScalarGridSpec(
            num_scalar_prefetch=0,
            grid=(num_layers, num_r),
            in_specs=[
                pl.BlockSpec((tm, n_pad), lambda lyr, r: (r, 0)),       # adj (bf16)
                pl.BlockSpec((n_pad, l), lambda lyr, r: (0, 0)),        # x (resident)
                pl.BlockSpec((None, two_l, l), lambda lyr, r: (lyr, 0, 0)),  # W stack
                pl.BlockSpec((None, 1, l), lambda lyr, r: (lyr, 0, 0)),      # b stack
            ],
            out_specs=pl.BlockSpec((tm, l), lambda lyr, r: (r, 0)),
            scratch_shapes=scratch,
        ),
        compiler_params=pltpu.CompilerParams(
            dimension_semantics=sem,
            vmem_limit_bytes=VMEM_LIMIT),
    )(adj, x, w_stack, b_stack)


# ----------------------------------------------------------------------
# Row-gather average: out[i] = 0.5 * (a[idx_a[i]] + b[idx_b[i]])
# Used for both avg_pool (graclus clusters have <= 2 members) and unpool-mix.
# ----------------------------------------------------------------------
def _gather_avg_kernel(idx_a_ref, idx_b_ref, a_ref, b_ref, out_ref):
    del idx_a_ref, idx_b_ref          # only consumed by the index_maps
    out_ref[...] = (a_ref[...] + b_ref[...]) * 0.5


def gather_avg(a, b, idx_a, idx_b):
    n_out = idx_a.shape[0]
    l = a.shape[-1]
    a3 = a.reshape(a.shape[0], 1, l)
    b3 = b.reshape(b.shape[0], 1, l)
    out = pl.pallas_call(
        _gather_avg_kernel,
        out_shape=jax.ShapeDtypeStruct((n_out, 1, l), F32),
        grid_spec=pltpu.PrefetchScalarGridSpec(
            num_scalar_prefetch=2,
            grid=(n_out,),
            in_specs=[
                pl.BlockSpec((1, 1, l), lambda i, ia, ib: (ia[i], 0, 0)),
                pl.BlockSpec((1, 1, l), lambda i, ia, ib: (ib[i], 0, 0)),
            ],
            out_specs=pl.BlockSpec((1, 1, l), lambda i, ia, ib: (i, 0, 0)),
        ),
        compiler_params=pltpu.CompilerParams(
            dimension_semantics=("arbitrary",),
            vmem_limit_bytes=VMEM_LIMIT),
    )(idx_a, idx_b, a3, b3)
    return out.reshape(n_out, l)


# ----------------------------------------------------------------------
# Row-tiled MLP head + softmax (lane-dense 128-wide padded logits)
# ----------------------------------------------------------------------
def _mlp_head_kernel(x_ref, w1, b1, w2, b2, w3, b3, wf, bf, out_ref):
    h = jnp.maximum(jnp.dot(x_ref[...], w1[...],
                            preferred_element_type=jnp.float32) + b1[...], 0.0)
    h = jnp.maximum(jnp.dot(h, w2[...],
                            preferred_element_type=jnp.float32) + b2[...], 0.0)
    h = jnp.maximum(jnp.dot(h, w3[...],
                            preferred_element_type=jnp.float32) + b3[...], 0.0)
    logits = jnp.dot(h, wf[...], preferred_element_type=jnp.float32) + bf[...]
    m = jnp.max(logits, axis=1, keepdims=True)
    e = jnp.exp(logits - m)
    s = jnp.sum(e, axis=1, keepdims=True)
    r0 = pl.reciprocal(s, approx=True)        # EUP slot
    r = r0 * (2.0 - s * r0)                   # one Newton step -> ~f32 exact
    out_ref[...] = e * r                      # softmax(dim=1)


def mlp_head(x, mp, *, tm):
    n_pad, l = x.shape
    width = mp["wf"].shape[1]
    _c2 = lambda i: (0, 0)
    return pl.pallas_call(
        _mlp_head_kernel,
        out_shape=jax.ShapeDtypeStruct((n_pad, width), F32),
        grid_spec=pltpu.PrefetchScalarGridSpec(
            num_scalar_prefetch=0,
            grid=(n_pad // tm,),
            in_specs=[pl.BlockSpec((tm, l), lambda i: (i, 0)),
                      pl.BlockSpec(mp["w1"].shape, _c2),
                      pl.BlockSpec(mp["b1"].shape, _c2),
                      pl.BlockSpec(mp["w2"].shape, _c2),
                      pl.BlockSpec(mp["b2"].shape, _c2),
                      pl.BlockSpec(mp["w3"].shape, _c2),
                      pl.BlockSpec(mp["b3"].shape, _c2),
                      pl.BlockSpec(mp["wf"].shape, _c2),
                      pl.BlockSpec(mp["bf"].shape, _c2)],
            out_specs=pl.BlockSpec((tm, width), lambda i: (i, 0)),
        ),
        compiler_params=pltpu.CompilerParams(
            dimension_semantics=("parallel",),
            vmem_limit_bytes=VMEM_LIMIT),
    )(x, mp["w1"], mp["b1"], mp["w2"], mp["b2"],
      mp["w3"], mp["b3"], mp["wf"], mp["bf"])


# ----------------------------------------------------------------------
# Host-side (numpy) graph structure glue — precomputed once per graph
# ----------------------------------------------------------------------
def mean_adjacency(edge_index, n, n_pad):
    """Padded dense row-normalised adjacency as bf16: A[i,j]=1/deg_in(i)."""
    A = np.zeros((n_pad, n_pad), np.float32)
    if edge_index.size:
        src, dst = edge_index
        np.add.at(A, (dst, src), 1.0)
    deg = A.sum(axis=1, keepdims=True)
    deg[deg == 0] = 1.0
    A /= deg
    return jnp.asarray(A, dtype=BF16)


def graclus_numpy(edge_index, num_nodes):
    """Greedy graclus matching (clusters of size <= 2). Host-side bookkeeping."""
    adj_list = [[] for _ in range(num_nodes)]
    if edge_index.size:
        for s, d in zip(edge_index[0], edge_index[1]):
            s, d = int(s), int(d)
            if s != d:
                adj_list[s].append(d)
    cluster = -np.ones(num_nodes, dtype=np.int64)
    for v in range(num_nodes):
        if cluster[v] >= 0:
            continue
        cluster[v] = v
        for u in adj_list[v]:
            if cluster[u] < 0:
                cid = min(u, v)
                cluster[v] = cid
                cluster[u] = cid
                break
    return cluster


def pool_edges(edge_index, inverse):
    """Remap edges through cluster inverse, drop self loops, coalesce."""
    if edge_index.size == 0:
        return np.zeros((2, 0), np.int64)
    src, dst = edge_index
    cs, cd = inverse[src], inverse[dst]
    mask = cs != cd
    cs, cd = cs[mask], cd[mask]
    if cs.size == 0:
        return np.zeros((2, 0), np.int64)
    pairs = np.unique(np.stack([cs, cd], axis=1), axis=0)
    return pairs.T.astype(np.int64)


def build_hierarchy(edge_index, n, l, thr):
    """Precompute every coarsening level's structure before any device work."""
    levels = []
    cur_edges = np.asarray(edge_index, np.int64)
    cur_n = n
    tm, n_pad = choose_tiling(cur_n, l)
    while cur_n > thr:
        adj = mean_adjacency(cur_edges, cur_n, n_pad)
        cluster = graclus_numpy(cur_edges, cur_n)
        _, inverse = np.unique(cluster, return_inverse=True)
        nc = int(inverse.max()) + 1
        # graclus is a matching => every cluster has <= 2 members, so the
        # scatter-mean of avg_pool is exactly a 2-row gather-average.
        m0 = np.full(nc, -1, np.int64)
        m1 = np.full(nc, -1, np.int64)
        for node, c in enumerate(inverse):
            if m0[c] < 0:
                m0[c] = node
                m1[c] = node
            else:
                m1[c] = node
        nxt_tm, nxt_pad = choose_tiling(nc, l)
        levels.append(dict(
            n=cur_n, n_pad=n_pad, tm=tm, adj=adj, nc=nc, nc_pad=nxt_pad,
            m0=jnp.asarray(np.pad(m0, (0, nxt_pad - nc)).astype(np.int32)),
            m1=jnp.asarray(np.pad(m1, (0, nxt_pad - nc)).astype(np.int32)),
            inverse=jnp.asarray(
                np.pad(inverse, (0, n_pad - cur_n)).astype(np.int32)),
        ))
        cur_edges = pool_edges(cur_edges, inverse)
        cur_n, tm, n_pad = nc, nxt_tm, nxt_pad
    coarse = dict(n=cur_n, n_pad=n_pad, tm=tm,
                  adj=mean_adjacency(cur_edges, cur_n, n_pad))
    return levels, coarse


# ----------------------------------------------------------------------
# Parameter initialisation (deterministic, synthetic)
# ----------------------------------------------------------------------
def init_sage_fused(key, in_dim, l):
    k1, k2, k3 = jax.random.split(key, 3)
    s = 1.0 / np.sqrt(in_dim)
    wl = jax.random.uniform(k1, (in_dim, l), F32, -s, s)
    wr = jax.random.uniform(k2, (in_dim, l), F32, -s, s)
    b = jax.random.uniform(k3, (1, l), F32, -s, s)
    if in_dim < l:
        # zero-pad input rows so every layer has a uniform (2l, l) fused weight
        pad = jnp.zeros((l - in_dim, l), F32)
        wl = jnp.concatenate([wl, pad], axis=0)
        wr = jnp.concatenate([wr, pad], axis=0)
    return jnp.concatenate([wl, wr], axis=0), b          # (2l, l), (1, l)


def init_sage_stack(key, in_dims, l):
    ws, bs = [], []
    for k, d in zip(jax.random.split(key, len(in_dims)), in_dims):
        w, b = init_sage_fused(k, d, l)
        ws.append(w)
        bs.append(b)
    return jnp.stack(ws), jnp.stack(bs)                  # (L,2l,l), (L,1,l)


def init_linear(key, in_dim, out_dim):
    k1, k2 = jax.random.split(key)
    s = 1.0 / np.sqrt(in_dim)
    return (jax.random.uniform(k1, (in_dim, out_dim), F32, -s, s),
            jax.random.uniform(k2, (1, out_dim), F32, -s, s))


def init_params(key, pe):
    l, pre, post, lins = pe["l"], pe["pre"], pe["post"], pe["lins"]
    kf, kpre, kpost, kc, k1, k2, k3, k4 = jax.random.split(key, 8)
    params = {
        "first": init_sage_stack(kf, [1], l),
        "pre": init_sage_stack(kpre, [l] * pre, l) if pre > 0 else None,
        "post": init_sage_stack(kpost, [l] * post, l) if post > 0 else None,
        "coarse": init_sage_stack(kc, [l], l),
    }
    w1, b1 = init_linear(k1, l, lins[0])
    w2, b2 = init_linear(k2, lins[0], lins[1])
    w3, b3 = init_linear(k3, lins[1], lins[2])
    wf, bf = init_linear(k4, lins[4], 2)
    # Pad the 2-class head to a lane-dense 128-wide logits block; padded
    # logits are a large negative so softmax over 128 lanes equals softmax
    # over the 2 real classes (sliced back to 2 outside the kernel).
    wf = jnp.concatenate([wf, jnp.zeros((lins[4], 126), F32)], axis=1)
    bf = jnp.concatenate([bf, jnp.full((1, 126), NEG_BIG, F32)], axis=1)
    params["mlp"] = dict(w1=w1, b1=b1, w2=w2, b2=b2, w3=w3, b3=b3, wf=wf, bf=bf)
    return params


# ----------------------------------------------------------------------
# Forward pass (mirrors ModelPartitioning.forward)
# ----------------------------------------------------------------------
def model_forward(params, x, edge_index, batch, pe):
    del batch  # single-graph batch; only relevant for multi-graph pooling
    l, thr = pe["l"], pe["coarsening_threshold"]
    n0 = x.shape[0]

    # ---- host: precompute the whole coarsening hierarchy (structure only) --
    levels, coarse = build_hierarchy(np.asarray(edge_index, np.int64), n0, l, thr)

    lvl0 = levels[0] if levels else coarse
    tm0 = lvl0["tm"]

    # ---- device: Pallas kernels back-to-back --------------------------------
    x = jnp.asarray(x, F32)
    x = jnp.pad(x, ((0, lvl0["n_pad"] - n0), (0, l - x.shape[1])))  # rows+feat pad

    x = sage_stack(lvl0["adj"], x, *params["first"], tm=tm0)

    x_saved = []
    for lv in levels:
        if params["pre"] is not None:
            x = sage_stack(lv["adj"], x, *params["pre"], tm=lv["tm"])
        x_saved.append(x)
        # avg_pool: exact 2-row gather mean per graclus cluster
        x = gather_avg(x, x, lv["m0"], lv["m1"])

    x = sage_stack(coarse["adj"], x, *params["coarse"], tm=coarse["tm"])

    for lv in reversed(levels):
        # unpool: x = (x_coarse[inverse] + x_saved) / 2
        xs = x_saved.pop()
        idx_b = jnp.arange(lv["n_pad"], dtype=jnp.int32)
        x = gather_avg(x, xs, lv["inverse"], idx_b)
        if params["post"] is not None:
            x = sage_stack(lv["adj"], x, *params["post"], tm=lv["tm"])

    out = mlp_head(x, params["mlp"], tm=tm0)
    return out[:n0, :2]


# ----------------------------------------------------------------------
if __name__ == "__main__":
    pe_params = {
        "l": 16,
        "pre": 1,
        "post": 1,
        "coarsening_threshold": 4,
        "activation": "relu",
        "lins": [32, 16, 8, 8, 8],   # lins[2] == lins[4] so final() is consistent
    }

    key = jax.random.PRNGKey(0)
    kx, kp = jax.random.split(key)

    # Small synthetic graph: ring of 16 nodes, edges stored in both directions.
    N = 16
    ring_src = np.arange(N)
    ring_dst = (np.arange(N) + 1) % N
    edge_index = np.concatenate(
        [np.stack([ring_src, ring_dst]), np.stack([ring_dst, ring_src])], axis=1
    ).astype(np.int64)                                   # [2, 32]
    x = jax.random.normal(kx, (N, 1), F32)               # node features [N, 1]
    batch = np.zeros((N,), np.int64)

    params = init_params(kp, pe_params)

    out = model_forward(params, x, edge_index, batch, pe_params)
    out = jax.block_until_ready(out)

    out_np = np.asarray(out)
    assert out_np.shape == (N, 2), out_np.shape
    assert np.all(np.isfinite(out_np))
    assert np.allclose(out_np.sum(axis=1), 1.0, atol=1e-4)
    print("KERNEL_OK")
</pallas_src>

<mosaic_0001>
module attributes {stable_mosaic.version = 11 : i64} {
  func.func @kernel(%arg0: i32, %arg1: i32, %arg2: memref<16x16xbf16, #tpu.memory_space<vmem>>, %arg3: memref<16x16xf32, #tpu.memory_space<vmem>>, %arg4: memref<1x32x16xf32, #tpu.memory_space<vmem>>, %arg5: memref<1x1x16xf32, #tpu.memory_space<vmem>>, %arg6: memref<16x16xf32, #tpu.memory_space<vmem>>) attributes {dimension_semantics = [#tpu.dimension_semantics<arbitrary>, #tpu.dimension_semantics<parallel>], iteration_bounds = array<i64: 1, 1>, scalar_prefetch = 0 : i64, scratch_operands = 0 : i64, tpu.core_type = #tpu.core_type<tc>, window_params = [{transform_indices = @transform_0, window_bounds = array<i64: 16, 16>}, {pipeline_mode = #tpu.pipeline_mode<synchronous>, transform_indices = @transform_1, window_bounds = array<i64: 16, 16>}, {transform_indices = @transform_2, window_bounds = array<i64: 1, 32, 16>}, {transform_indices = @transform_3, window_bounds = array<i64: 1, 1, 16>}, {transform_indices = @transform_4, window_bounds = array<i64: 16, 16>}]} {
    %c0 = arith.constant 0 : index
    %c0_0 = arith.constant 0 : index
    %0 = vector.load %arg2[%c0, %c0_0] : memref<16x16xbf16, #tpu.memory_space<vmem>>, vector<16x16xbf16>
    %c0_1 = arith.constant 0 : index
    %c0_2 = arith.constant 0 : index
    %1 = vector.load %arg3[%c0_1, %c0_2] : memref<16x16xf32, #tpu.memory_space<vmem>>, vector<16x16xf32>
    %2 = arith.truncf %1 : vector<16x16xf32> to vector<16x16xbf16>
    %cst = arith.constant dense<0.000000e+00> : vector<16x16xf32>
    %3 = tpu.matmul %0, %2, %cst {dimension_numbers = #tpu.dot_dimension_numbers<[1], [0], [0], [1], [0, 0, 1, 1], [], []>} : vector<16x16xbf16>, vector<16x16xbf16>, vector<16x16xf32> -> vector<16x16xf32>
    %c16_i32 = arith.constant 16 : i32
    %4 = arith.muli %arg1, %c16_i32 : i32
    %5 = tpu.assume_multiple %4, 16 : i32
    %6 = arith.index_cast %5 : i32 to index
    %c0_3 = arith.constant 0 : index
    %7 = vector.load %arg3[%6, %c0_3] : memref<16x16xf32, #tpu.memory_space<vmem>>, vector<16x16xf32>
    %c0_4 = arith.constant 0 : index
    %c0_5 = arith.constant 0 : index
    %c0_6 = arith.constant 0 : index
    %8 = vector.load %arg4[%c0_4, %c0_5, %c0_6] : memref<1x32x16xf32, #tpu.memory_space<vmem>>, vector<1x32x16xf32>
    %9 = vector.shape_cast %8 : vector<1x32x16xf32> to vector<32x16xf32>
    %10 = vector.extract_strided_slice %9 {offsets = [0, 0], sizes = [16, 16], strides = [1, 1]} : vector<32x16xf32> to vector<16x16xf32>
    %cst_7 = arith.constant dense<0.000000e+00> : vector<16x16xf32>
    %11 = tpu.matmul %3, %10, %cst_7 {dimension_numbers = #tpu.dot_dimension_numbers<[1], [0], [0], [1], [0, 0, 1, 1], [], []>} : vector<16x16xf32>, vector<16x16xf32>, vector<16x16xf32> -> vector<16x16xf32>
    %12 = vector.extract_strided_slice %9 {offsets = [16, 0], sizes = [16, 16], strides = [1, 1]} : vector<32x16xf32> to vector<16x16xf32>
    %cst_8 = arith.constant dense<0.000000e+00> : vector<16x16xf32>
    %13 = tpu.matmul %7, %12, %cst_8 {dimension_numbers = #tpu.dot_dimension_numbers<[1], [0], [0], [1], [0, 0, 1, 1], [], []>} : vector<16x16xf32>, vector<16x16xf32>, vector<16x16xf32> -> vector<16x16xf32>
    %14 = arith.addf %11, %13 : vector<16x16xf32>
    %c0_9 = arith.constant 0 : index
    %c0_10 = arith.constant 0 : index
    %c0_11 = arith.constant 0 : index
    %15 = vector.load %arg5[%c0_9, %c0_10, %c0_11] : memref<1x1x16xf32, #tpu.memory_space<vmem>>, vector<1x1x16xf32>
    %16 = vector.shape_cast %15 : vector<1x1x16xf32> to vector<1x16xf32>
    %17 = vector.broadcast %16 : vector<1x16xf32> to vector<16x16xf32>
    %18 = arith.addf %14, %17 : vector<16x16xf32>
    %cst_12 = arith.constant 0.000000e+00 : f32
    %19 = vector.broadcast %cst_12 : f32 to vector<16x16xf32>
    %20 = arith.maximumf %18, %19 : vector<16x16xf32>
    %c0_13 = arith.constant 0 : index
    %c0_14 = arith.constant 0 : index
    %21 = vector.load %arg6[%c0_13, %c0_14] : memref<16x16xf32, #tpu.memory_space<vmem>>, vector<16x16xf32>
    tpu.vector_store %arg6[%c0_13, %c0_14], %20 {strides = array<i32>} : memref<16x16xf32, #tpu.memory_space<vmem>>, vector<16x16xf32>,
    return
  }
  func.func @transform_0(%arg0: i32, %arg1: i32) -> (i32, i32) {
    %c0_i32 = arith.constant 0 : i32
    %c0_i32_0 = arith.constant 0 : i32
    return %arg1, %c0_i32 : i32, i32
  }
  func.func @transform_1(%arg0: i32, %arg1: i32) -> (i32, i32) {
    %c0_i32 = arith.constant 0 : i32
    %c0_i32_0 = arith.constant 0 : i32
    %c0_i32_1 = arith.constant 0 : i32
    return %c0_i32, %c0_i32_0 : i32, i32
  }
  func.func @transform_2(%arg0: i32, %arg1: i32) -> (i32, i32, i32) {
    %c0_i32 = arith.constant 0 : i32
    %c0_i32_0 = arith.constant 0 : i32
    %c0_i32_1 = arith.constant 0 : i32
    return %arg0, %c0_i32, %c0_i32_0 : i32, i32, i32
  }
  func.func @transform_3(%arg0: i32, %arg1: i32) -> (i32, i32, i32) {
    %c0_i32 = arith.constant 0 : i32
    %c0_i32_0 = arith.constant 0 : i32
    %c0_i32_1 = arith.constant 0 : i32
    return %arg0, %c0_i32, %c0_i32_0 : i32, i32, i32
  }
  func.func @transform_4(%arg0: i32, %arg1: i32) -> (i32, i32) {
    %c0_i32 = arith.constant 0 : i32
    %c0_i32_0 = arith.constant 0 : i32
    return %arg1, %c0_i32 : i32, i32
  }
}

</mosaic_0001>

<llo_original>
// kernel: tpu_custom_call.1
$region0: #{tpu_custom_call.1}
  #allocation0 [shape = 'u32[]', space=smem, size = 0x4, offset = 0x4, fixed_abs, tag = 'smem constant byte address 0x4 - core index']
  #allocation1 [shape = 'u32[144,128]{1,0:T(1,128)}', space=vmem, size = 0x12000, scoped, tag = 'internal scratch']
  %s0 = inlined_call_operand.vmem [shape: bf16[16,16], index: 0, kind: input, shape index: {}]
  %s1 = inlined_call_operand.vmem [shape: f32[16,16], index: 1, kind: input, shape index: {}]
  %s2 = inlined_call_operand.vmem [shape: f32[1,32,16], index: 2, kind: input, shape index: {}]
  %s3 = inlined_call_operand.vmem [shape: f32[1,1,16], index: 3, kind: input, shape index: {}]
  %s4 = inlined_call_operand.hbm [shape: f32[16,16], index: 4, kind: output, shape index: {}]
  %s5 = sld [smem:[#allocation0]]
  $region26: #{tpu_custom_call.1} parent=0
    _
  %s7 = ssub.s32 1, %s5
  %s8 = scalar_select 0, %s7, %s5
  $region1: #{tpu_custom_call.1} parent=0
    #allocation2 [shape = 'u8[8192]{0}', space=vmem, size = 0x2000, scoped, tag = 'output window, operand 0, single buffered']
    #allocation3 [shape = 's32[1]{0}', space=sflag, size = 0x4, scoped, tag = 'scoped memory for tpu_custom_call.1']
    %9 = vsyncpa [#allocation3], 0
    // Predicated region
    $region2: #{tpu_custom_call.1} parent=1 // pred_check
      _
    $region3: #{tpu_custom_call.1} parent=1 // pred_check_branch
      %11 = sbr.rel (0) target = $region5
    $region4: #{tpu_custom_call.1} parent=1 // pred_region
      _
    $region5: #{tpu_custom_call.1} parent=1 // pred_fallthru
      _
    // Predicated region
    $region6: #{tpu_custom_call.1} parent=1 // pred_check
      _
    $region7: #{tpu_custom_call.1} parent=1 // pred_check_branch
      %13 = sbr.rel (0) target = $region9
    $region8: #{tpu_custom_call.1} parent=1 // pred_region
      _
    $region9: #{tpu_custom_call.1} parent=1 // pred_fallthru
      _
    // Predicated region
    $region10: #{tpu_custom_call.1} parent=1 // pred_check
      _
    $region11: #{tpu_custom_call.1} parent=1 // pred_check_branch
      %15 = sbr.rel (0) target = $region13
    $region12: #{tpu_custom_call.1} parent=1 // pred_region
      _
    $region13: #{tpu_custom_call.1} parent=1 // pred_fallthru
      _
    // Predicated region
    $region14: #{tpu_custom_call.1} parent=1 // pred_check
      _
    $region15: #{tpu_custom_call.1} parent=1 // pred_check_branch
      %17 = sbr.rel (0) target = $region17
    $region16: #{tpu_custom_call.1} parent=1 // pred_region
      _
    $region17: #{tpu_custom_call.1} parent=1 // pred_fallthru
      _
    %v19 = vld [vmem:[%s0] sm:$0xf]
    %v20 = vld [vmem:[%s0 + $0x4] sm:$0xf]
    %v21 = vld [vmem:[%s1] sm:$0xff]
    %v22 = vld [vmem:[%s1 + $0x8] sm:$0xff]
    %v23 = vpack.c.bf16 %v22, %v21
    %v26 = vunpack.c.l.b16 %v19
    %v27 = vunpack.c.l.b16 %v20
    %v28 = vpack.c.b16 %v27, %v26
    %vm29 = vcmask 130048
    %v31 = vsel %vm29, %v28, 0
    %33 = vmatprep.subr.bf16.mxu0 0
    %34 = vmatpush1.bf16.msra.mxu0 0
    %35 = vmatprep.subr.bf16.mxu0 0
    %36 = vmatpush1.bf16.msra.mxu0 0
    %37 = vmatprep.subr.bf16.mxu0 0
    %38 = vmatpush1.bf16.msra.mxu0 0
    %39 = vmatprep.subr.bf16.mxu0 0
    %40 = vmatpush1.bf16.msra.mxu0 0
    %41 = vmatprep.subr.bf16.mxu0 0
    %42 = vmatpush1.bf16.msra.mxu0 0
    %43 = vmatprep.subr.bf16.mxu0 0
    %44 = vmatpush1.bf16.msra.mxu0 0
    %45 = vmatprep.subr.bf16.mxu0 0
    %46 = vmatpush1.bf16.msra.mxu0 0
    %47 = vmatprep.subr.bf16.mxu0 0
    %48 = vmatpush1.bf16.msra.mxu0 %v23
    %49 = vmatprep.subr.bf16.mxu0 0
    %50 = vmatpush2.bf16.msra.mxu0 0
    %51 = vmatprep.subr.bf16.mxu0 0
    %52 = vmatpush2.bf16.msra.mxu0 0
    %53 = vmatprep.subr.bf16.mxu0 0
    %54 = vmatpush2.bf16.msra.mxu0 0
    %55 = vmatprep.subr.bf16.mxu0 0
    %56 = vmatpush2.bf16.msra.mxu0 0
    %57 = vmatprep.subr.bf16.mxu0 0
    %58 = vmatpush2.bf16.msra.mxu0 0
    %59 = vmatprep.subr.bf16.mxu0 0
    %60 = vmatpush2.bf16.msra.mxu0 0
    %61 = vmatprep.subr.bf16.mxu0 0
    %62 = vmatpush2.bf16.msra.mxu0 0
    %63 = vmatprep.subr.bf16.mxu0 0
    %64 = vmatpush2.bf16.msra.mxu0 0
    %65 = vmatprep.mubr.bf16.mxu0 0
    %66 = vmatmul.mubr.bf16.gmra.mxu0 %v31
    %v67 = vpop.f32.mrf.mxu0
    %v68 = vadd.f32 0.0, %v67
    %v69 = vpop.f32.mrf.mxu0
    %v70 = vpop.f32.mrf.mxu0
    %v71 = vadd.f32 0.0, %v70
    %v72 = vpop.f32.mrf.mxu0
    %73 = vdwg.mxu0
    %s74 = smul.u32 0, 16
    %s75 = scalar_lea.vmem %s1, %s74
    %v76 = vld [vmem:[%s75] sm:$0xff]
    %v77 = vld [vmem:[%s75 + $0x8] sm:$0xff]
    %v78 = vld [vmem:[%s2] sm:$0xff]
    %v79 = vld [vmem:[%s2 + $0x8] sm:$0xff]
    %v80 = vld [vmem:[%s2 + $0x10] sm:$0xff]
    %v81 = vld [vmem:[%s2 + $0x18] sm:$0xff]
    %v83 = vsel %vm29, %v76, 0
    %v86 = vsel %vm29, %v77, 0
    %88 = vmatprep.subr.mxu0 0.0
    %89 = vmatpush1.msra.mxu0 0.0
    %90 = vmatprep.subr.mxu0 0.0
    %91 = vmatpush1.msra.mxu0 0.0
    %92 = vmatprep.subr.mxu0 0.0
    %93 = vmatpush1.msra.mxu0 0.0
    %94 = vmatprep.subr.mxu0 0.0
    %95 = vmatpush1.msra.mxu0 0.0
    %96 = vmatprep.subr.mxu0 0.0
    %97 = vmatpush1.msra.mxu0 0.0
    %98 = vmatprep.subr.mxu0 0.0
    %99 = vmatpush1.msra.mxu0 0.0
    %100 = vmatprep.subr.mxu0 0.0
    %101 = vmatpush1.msra.mxu0 0.0
    %102 = vmatprep.subr.mxu0 0.0
    %103 = vmatpush1.msra.mxu0 0.0
    %104 = vmatprep.subr.mxu0 0.0
    %105 = vmatpush1.msra.mxu0 0.0
    %106 = vmatprep.subr.mxu0 0.0
    %107 = vmatpush1.msra.mxu0 0.0
    %108 = vmatprep.subr.mxu0 0.0
    %109 = vmatpush1.msra.mxu0 0.0
    %110 = vmatprep.subr.mxu0 0.0
    %111 = vmatpush1.msra.mxu0 0.0
    %112 = vmatprep.subr.mxu0 0.0
    %113 = vmatpush1.msra.mxu0 0.0
    %114 = vmatprep.subr.mxu0 0.0
    %115 = vmatpush1.msra.mxu0 0.0
    %116 = vmatprep.subr.mxu0 0.0
    %117 = vmatpush1.msra.mxu0 %v81
    %118 = vmatprep.subr.mxu0 0.0
    %119 = vmatpush1.msra.mxu0 %v80
    %120 = vmatprep.subr.mxu0 0.0
    %121 = vmatpush2.msra.mxu0 0.0
    %122 = vmatprep.subr.mxu0 0.0
    %123 = vmatpush2.msra.mxu0 0.0
    %124 = vmatprep.subr.mxu0 0.0
    %125 = vmatpush2.msra.mxu0 0.0
    %126 = vmatprep.subr.mxu0 0.0
    %127 = vmatpush2.msra.mxu0 0.0
    %128 = vmatprep.subr.mxu0 0.0
    %129 = vmatpush2.msra.mxu0 0.0
    %130 = vmatprep.subr.mxu0 0.0
    %131 = vmatpush2.msra.mxu0 0.0
    %132 = vmatprep.subr.mxu0 0.0
    %133 = vmatpush2.msra.mxu0 0.0
    %134 = vmatprep.subr.mxu0 0.0
    %135 = vmatpush2.msra.mxu0 0.0
    %136 = vmatprep.subr.mxu0 0.0
    %137 = vmatpush2.msra.mxu0 0.0
    %138 = vmatprep.subr.mxu0 0.0
    %139 = vmatpush2.msra.mxu0 0.0
    %140 = vmatprep.subr.mxu0 0.0
    %141 = vmatpush2.msra.mxu0 0.0
    %142 = vmatprep.subr.mxu0 0.0
    %143 = vmatpush2.msra.mxu0 0.0
    %144 = vmatprep.subr.mxu0 0.0
    %145 = vmatpush2.msra.mxu0 0.0
    %146 = vmatprep.subr.mxu0 0.0
    %147 = vmatpush2.msra.mxu0 0.0
    %148 = vmatprep.subr.mxu0 0.0
    %149 = vmatpush2.msra.mxu0 0.0
    %150 = vmatprep.subr.mxu0 0.0
    %151 = vmatpush2.msra.mxu0 0.0
    %152 = vmatprep.mubr.f32.mxu0 0.0
    %153 = vmatmul.mubr.f32.gmra.mxu0 %v83
    %v154 = vpop.f32.mrf.mxu0
    %v155 = vadd.f32 0.0, %v154
    %v156 = vpop.f32.mrf.mxu0
    %157 = vmatprep.mubr.f32.mxu0 0.0
    %158 = vmatmul.mubr.f32.gmra.mxu0 %v86
    %v159 = vpop.f32.mrf.mxu0
    %v160 = vadd.f32 0.0, %v159
    %v161 = vpop.f32.mrf.mxu0
    %162 = vdwg.mxu0
    %v164 = vsel %vm29, %v68, 0
    %v167 = vsel %vm29, %v71, 0
    %169 = vmatprep.subr.mxu0 0.0
    %170 = vmatpush1.msra.mxu0 0.0
    %171 = vmatprep.subr.mxu0 0.0
    %172 = vmatpush1.msra.mxu0 0.0
    %173 = vmatprep.subr.mxu0 0.0
    %174 = vmatpush1.msra.mxu0 0.0
    %175 = vmatprep.subr.mxu0 0.0
    %176 = vmatpush1.msra.mxu0 0.0
    %177 = vmatprep.subr.mxu0 0.0
    %178 = vmatpush1.msra.mxu0 0.0
    %179 = vmatprep.subr.mxu0 0.0
    %180 = vmatpush1.msra.mxu0 0.0
    %181 = vmatprep.subr.mxu0 0.0
    %182 = vmatpush1.msra.mxu0 0.0
    %183 = vmatprep.subr.mxu0 0.0
    %184 = vmatpush1.msra.mxu0 0.0
    %185 = vmatprep.subr.mxu0 0.0
    %186 = vmatpush1.msra.mxu0 0.0
    %187 = vmatprep.subr.mxu0 0.0
    %188 = vmatpush1.msra.mxu0 0.0
    %189 = vmatprep.subr.mxu0 0.0
    %190 = vmatpush1.msra.mxu0 0.0
    %191 = vmatprep.subr.mxu0 0.0
    %192 = vmatpush1.msra.mxu0 0.0
    %193 = vmatprep.subr.mxu0 0.0
    %194 = vmatpush1.msra.mxu0 0.0
    %195 = vmatprep.subr.mxu0 0.0
    %196 = vmatpush1.msra.mxu0 0.0
    %197 = vmatprep.subr.mxu0 0.0
    %198 = vmatpush1.msra.mxu0 %v79
    %199 = vmatprep.subr.mxu0 0.0
    %200 = vmatpush1.msra.mxu0 %v78
    %201 = vmatprep.subr.mxu0 0.0
    %202 = vmatpush2.msra.mxu0 0.0
    %203 = vmatprep.subr.mxu0 0.0
    %204 = vmatpush2.msra.mxu0 0.0
    %205 = vmatprep.subr.mxu0 0.0
    %206 = vmatpush2.msra.mxu0 0.0
    %207 = vmatprep.subr.mxu0 0.0
    %208 = vmatpush2.msra.mxu0 0.0
    %209 = vmatprep.subr.mxu0 0.0
    %210 = vmatpush2.msra.mxu0 0.0
    %211 = vmatprep.subr.mxu0 0.0
    %212 = vmatpush2.msra.mxu0 0.0
    %213 = vmatprep.subr.mxu0 0.0
    %214 = vmatpush2.msra.mxu0 0.0
    %215 = vmatprep.subr.mxu0 0.0
    %216 = vmatpush2.msra.mxu0 0.0
    %217 = vmatprep.subr.mxu0 0.0
    %218 = vmatpush2.msra.mxu0 0.0
    %219 = vmatprep.subr.mxu0 0.0
    %220 = vmatpush2.msra.mxu0 0.0
    %221 = vmatprep.subr.mxu0 0.0
    %222 = vmatpush2.msra.mxu0 0.0
    %223 = vmatprep.subr.mxu0 0.0
    %224 = vmatpush2.msra.mxu0 0.0
    %225 = vmatprep.subr.mxu0 0.0
    %226 = vmatpush2.msra.mxu0 0.0
    %227 = vmatprep.subr.mxu0 0.0
    %228 = vmatpush2.msra.mxu0 0.0
    %229 = vmatprep.subr.mxu0 0.0
    %230 = vmatpush2.msra.mxu0 0.0
    %231 = vmatprep.subr.mxu0 0.0
    %232 = vmatpush2.msra.mxu0 0.0
    %233 = vmatprep.mubr.f32.mxu0 0.0
    %234 = vmatmul.mubr.f32.gmra.mxu0 %v164
    %v235 = vpop.f32.mrf.mxu0
    %v236 = vadd.f32 %v155, %v235
    %v237 = vpop.f32.mrf.mxu0
    %238 = vmatprep.mubr.f32.mxu0 0.0
    %239 = vmatmul.mubr.f32.gmra.mxu0 %v167
    %v240 = vpop.f32.mrf.mxu0
    %v241 = vadd.f32 %v160, %v240
    %v242 = vpop.f32.mrf.mxu0
    %243 = vdwg.mxu0
    %v244 = vld [vmem:[%s3] sm:$0x1]
    %v246 = vlaneseq
    %v247 = vshrl.u32 %v246, 7
    %v248 = vsub.s32 0, %v247
    %v249 = vrot.slane %v244, %v248
    %v251 = vadd.f32 %v236, %v249
    %v252 = vadd.f32 %v241, %v249
    %v253 = vmax.f32 %v251, 0.0
    %v254 = vmax.f32 %v252, 0.0
    %255 = vst.msk [vmem:[#allocation2] sm:$0xff] %vm29, %v253
    %256 = vst.msk [vmem:[#allocation2 + $0x8] sm:$0xff] %vm29, %v254
    // Predicated region
    $region18: #{tpu_custom_call.1} parent=1 // pred_check
      _
    $region19: #{tpu_custom_call.1} parent=1 // pred_check_branch
      %258 = sbr.rel (0) target = $region21
    $region20: #{tpu_custom_call.1} parent=1 // pred_region
      %s260 = ssub.s32 256, 256
      %261 = vsyncadd [#allocation3], %s260
      %s262 = sshll.u32 [#allocation2], 4
      %s263 = int_to_ptr.vmem [resolvable:$true] %s262
      %268 = dma.vmem_to_hbm [thread:$0]  %s263, 256, %s4, [#allocation3], 128, 128, 8
    $region21: #{tpu_custom_call.1} parent=1 // pred_fallthru
      _
    // Predicated region
    $region22: #{tpu_custom_call.1} parent=1 // pred_check
      _
    $region23: #{tpu_custom_call.1} parent=1 // pred_check_branch
      %270 = sbr.rel (0) target = $region25
    $region24: #{tpu_custom_call.1} parent=1 // pred_region
      %271 = dma.done [#allocation3], 256
    $region25: #{tpu_custom_call.1} parent=1 // pred_fallthru
      _
    %272 = vsyncpa [#allocation3], 1

</llo_original>
